<compile_context>
chip_gen: v7x
topology: tpu7x:2x2x1
jax: 0.10.0
libtpu: 0.0.40
codegen_flags: <defaults>
</compile_context>

<pallas_src>
import jax
import jax.numpy as jnp
from jax.experimental import pallas as pl
from jax.experimental.pallas import tpu as pltpu


def _round_up(x, m):
    return ((x + m - 1) // m) * m


def _fc1_sigmoid_kernel(z_ref, w_ref, b_ref, o_ref):
    # z_ref: (TB, D), w_ref: (D, H), b_ref: (1, H), o_ref: (TB, H)
    y = jnp.dot(z_ref[...], w_ref[...], preferred_element_type=jnp.float32)
    y = y + b_ref[...]                       # broadcast bias over batch rows
    # Exact sigmoid with a single EUP transcendental per element:
    #   sigmoid(y) = 0.5 * (tanh(0.5 * y) + 1)
    o_ref[...] = (0.5 * (jnp.tanh(0.5 * y) + 1.0)).astype(o_ref.dtype)


def cov_rec_forward(z, w1, b1, *, tb_max=8192):
    """Pallas equivalent of cov_rec.forward.

    z  : (B, z_dim // 2) float32
    w1 : (z_dim // 2, 100) float32   (fc1 weight, transposed to (in, out))
    b1 : (100,) float32              (fc1 bias)
    returns (B, 100, 1) float32      == sigmoid(fc1(z)).unsqueeze(2)
    """
    B, D = z.shape
    H = w1.shape[1]

    z = z.astype(jnp.float32)
    w1 = w1.astype(jnp.float32)
    b_row = b1.reshape(1, H).astype(jnp.float32)

    # Batch tile: multiple of 8 sublanes, capped so VMEM stays comfortable.
    TB = min(tb_max, _round_up(B, 8))
    grid = (pl.cdiv(B, TB),)                 # ragged last block handled by Pallas

    cost = pl.CostEstimate(
        flops=2 * B * D * H,
        transcendentals=B * H,
        bytes_accessed=(B * D + B * H + D * H + H) * 4,
    )

    out = pl.pallas_call(
        _fc1_sigmoid_kernel,
        out_shape=jax.ShapeDtypeStruct((B, H), jnp.float32),
        grid=grid,
        in_specs=[
            # z tile marches down the batch dimension.
            pl.BlockSpec((TB, D), lambda i: (i, 0)),
            # weight / bias stay resident (constant block index -> no re-DMA).
            pl.BlockSpec((D, H), lambda i: (0, 0)),
            pl.BlockSpec((1, H), lambda i: (0, 0)),
        ],
        out_specs=pl.BlockSpec((TB, H), lambda i: (i, 0)),
        compiler_params=pltpu.CompilerParams(
            dimension_semantics=("parallel",),
        ),
        cost_estimate=cost,
    )(z, w1, b_row)

    # torch's .unsqueeze(2): (B, 100) -> (B, 100, 1).  Done outside the kernel;
    # consumers that can take (B, 100) directly should drop this reshape.
    return out.reshape(B, H, 1)


if __name__ == "__main__":
    # Small, deterministic example consistent with the module:
    # z_dim = 16 -> rec = mlp_ieeesmall(8) -> fc1: Linear(8, 100)
    z_dim = 16
    in_dim = z_dim // 2          # 8
    hidden = 100
    batch = 2

    key = jax.random.PRNGKey(0)
    k_z, k_w, k_b = jax.random.split(key, 3)

    # Deterministic parameter init mimicking nn.Linear's U(-1/sqrt(in), 1/sqrt(in)).
    bound = 1.0 / jnp.sqrt(jnp.float32(in_dim))
    w1 = jax.random.uniform(k_w, (in_dim, hidden), jnp.float32, -bound, bound)
    b1 = jax.random.uniform(k_b, (hidden,), jnp.float32, -bound, bound)

    z = jax.random.normal(k_z, (batch, in_dim), jnp.float32)

    out = cov_rec_forward(z, w1, b1)
    out = jax.block_until_ready(out)

    # Cross-check against a plain-JAX reference of the same math (exact sigmoid
    # in the kernel -> tight tolerance).
    ref = jax.nn.sigmoid(z @ w1 + b1)[:, :, None]
    assert out.shape == (batch, hidden, 1), out.shape
    assert jnp.allclose(out, ref, atol=1e-5, rtol=1e-5), \
        float(jnp.max(jnp.abs(out - ref)))

    print("KERNEL_OK")
</pallas_src>

<mosaic_0001>
module attributes {stable_mosaic.version = 11 : i64} {
  func.func @_fc1_sigmoid_kernel(%arg0: i32, %arg1: memref<8x8xf32, #tpu.memory_space<vmem>>, %arg2: memref<8x100xf32, #tpu.memory_space<vmem>>, %arg3: memref<1x100xf32, #tpu.memory_space<vmem>>, %arg4: memref<8x100xf32, #tpu.memory_space<vmem>>) attributes {dimension_semantics = [#tpu.dimension_semantics<parallel>], iteration_bounds = array<i64: 1>, scalar_prefetch = 0 : i64, scratch_operands = 0 : i64, tpu.core_type = #tpu.core_type<tc>, window_params = [{transform_indices = @transform_0, window_bounds = array<i64: 8, 8>}, {pipeline_mode = #tpu.pipeline_mode<synchronous>, transform_indices = @transform_1, window_bounds = array<i64: 8, 100>}, {pipeline_mode = #tpu.pipeline_mode<synchronous>, transform_indices = @transform_2, window_bounds = array<i64: 1, 100>}, {transform_indices = @transform_3, window_bounds = array<i64: 8, 100>}]} {
    %c0 = arith.constant 0 : index
    %c0_0 = arith.constant 0 : index
    %0 = vector.load %arg1[%c0, %c0_0] : memref<8x8xf32, #tpu.memory_space<vmem>>, vector<8x8xf32>
    %c0_1 = arith.constant 0 : index
    %c0_2 = arith.constant 0 : index
    %1 = vector.load %arg2[%c0_1, %c0_2] : memref<8x100xf32, #tpu.memory_space<vmem>>, vector<8x100xf32>
    %cst = arith.constant dense<0.000000e+00> : vector<8x100xf32>
    %2 = tpu.matmul %0, %1, %cst {dimension_numbers = #tpu.dot_dimension_numbers<[1], [0], [0], [1], [0, 0, 1, 1], [], []>} : vector<8x8xf32>, vector<8x100xf32>, vector<8x100xf32> -> vector<8x100xf32>
    %c0_3 = arith.constant 0 : index
    %c0_4 = arith.constant 0 : index
    %3 = vector.load %arg3[%c0_3, %c0_4] : memref<1x100xf32, #tpu.memory_space<vmem>>, vector<1x100xf32>
    %4 = vector.broadcast %3 : vector<1x100xf32> to vector<8x100xf32>
    %5 = arith.addf %2, %4 : vector<8x100xf32>
    %cst_5 = arith.constant 5.000000e-01 : f32
    %6 = vector.broadcast %cst_5 : f32 to vector<8x100xf32>
    %7 = arith.mulf %6, %5 : vector<8x100xf32>
    %8 = math.tanh %7 : vector<8x100xf32>
    %cst_6 = arith.constant 1.000000e+00 : f32
    %9 = vector.broadcast %cst_6 : f32 to vector<8x100xf32>
    %10 = arith.addf %8, %9 : vector<8x100xf32>
    %cst_7 = arith.constant 5.000000e-01 : f32
    %11 = vector.broadcast %cst_7 : f32 to vector<8x100xf32>
    %12 = arith.mulf %11, %10 : vector<8x100xf32>
    %c0_8 = arith.constant 0 : index
    %c0_9 = arith.constant 0 : index
    %13 = vector.load %arg4[%c0_8, %c0_9] : memref<8x100xf32, #tpu.memory_space<vmem>>, vector<8x100xf32>
    tpu.vector_store %arg4[%c0_8, %c0_9], %12 {strides = array<i32>} : memref<8x100xf32, #tpu.memory_space<vmem>>, vector<8x100xf32>,
    return
  }
  func.func @transform_0(%arg0: i32) -> (i32, i32) {
    %c0_i32 = arith.constant 0 : i32
    %c0_i32_0 = arith.constant 0 : i32
    return %arg0, %c0_i32 : i32, i32
  }
  func.func @transform_1(%arg0: i32) -> (i32, i32) {
    %c0_i32 = arith.constant 0 : i32
    %c0_i32_0 = arith.constant 0 : i32
    %c0_i32_1 = arith.constant 0 : i32
    return %c0_i32, %c0_i32_0 : i32, i32
  }
  func.func @transform_2(%arg0: i32) -> (i32, i32) {
    %c0_i32 = arith.constant 0 : i32
    %c0_i32_0 = arith.constant 0 : i32
    %c0_i32_1 = arith.constant 0 : i32
    return %c0_i32, %c0_i32_0 : i32, i32
  }
  func.func @transform_3(%arg0: i32) -> (i32, i32) {
    %c0_i32 = arith.constant 0 : i32
    %c0_i32_0 = arith.constant 0 : i32
    return %arg0, %c0_i32 : i32, i32
  }
}

</mosaic_0001>

<llo_original>
// kernel: tpu_custom_call.1
$region0: #{tpu_custom_call.1}
  #allocation0 [shape = 'u32[]', space=smem, size = 0x4, offset = 0x4, fixed_abs, tag = 'smem constant byte address 0x4 - core index']
  #allocation1 [shape = 'u32[144,128]{1,0:T(1,128)}', space=vmem, size = 0x12000, scoped, tag = 'internal scratch']
  %s0 = inlined_call_operand.hbm [shape: f32[2,8], index: 0, kind: input, shape index: {}]
  %s1 = inlined_call_operand.hbm [shape: f32[8,100], index: 1, kind: input, shape index: {}]
  %s2 = inlined_call_operand.vmem [shape: f32[1,100], index: 2, kind: input, shape index: {}]
  %s3 = inlined_call_operand.hbm [shape: f32[2,100], index: 3, kind: output, shape index: {}]
  %s4 = sld [smem:[#allocation0]]
  $region30: #{tpu_custom_call.1} parent=0
    _
  %s6 = ssub.s32 1, %s4
  %s7 = scalar_select 0, %s6, %s4
  $region1: #{tpu_custom_call.1} parent=0
    #allocation2 [shape = 'u8[4096]{0}', space=vmem, size = 0x1000, scoped, tag = 'input window, operand 0, single buffered']
    #allocation3 [shape = 's32[1]{0}', space=sflag, size = 0x4, scoped, tag = 'scoped memory for tpu_custom_call.1']
    #allocation4 [shape = 's32[1]{0}', space=sflag, size = 0x4, scoped, tag = 'scoped memory for tpu_custom_call.1']
    #allocation5 [shape = 'u8[4096]{0}', space=vmem, size = 0x1000, scoped, tag = 'input window, operand 1, single buffered']
    #allocation6 [shape = 's32[1]{0}', space=sflag, size = 0x4, scoped, tag = 'scoped memory for tpu_custom_call.1']
    #allocation7 [shape = 'u8[4096]{0}', space=vmem, size = 0x1000, scoped, tag = 'output window, operand 0, single buffered']
    %8 = vsyncpa [#allocation3], 0
    %9 = vsyncpa [#allocation6], 0
    %10 = vsyncpa [#allocation4], 0
    // Predicated region
    $region2: #{tpu_custom_call.1} parent=1 // pred_check
      _
    $region3: #{tpu_custom_call.1} parent=1 // pred_check_branch
      %12 = sbr.rel (0) target = $region5
    $region4: #{tpu_custom_call.1} parent=1 // pred_region
      %s14 = ssub.s32 128, 32
      %15 = vsyncadd [#allocation3], %s14
      %s16 = sshll.u32 [#allocation2], 4
      %s17 = int_to_ptr.vmem [resolvable:$true] %s16
      %22 = dma.hbm_to_vmem [thread:$0]  %s0, 32, %s17, [#allocation3], 32, 32, 2
    $region5: #{tpu_custom_call.1} parent=1 // pred_fallthru
      _
    // Predicated region
    $region6: #{tpu_custom_call.1} parent=1 // pred_check
      _
    $region7: #{tpu_custom_call.1} parent=1 // pred_check_branch
      %24 = sbr.rel (0) target = $region9
    $region8: #{tpu_custom_call.1} parent=1 // pred_region
      %s26 = ssub.s32 128, 128
      %27 = vsyncadd [#allocation6], %s26
      %s29 = sshll.u32 [#allocation5], 4
      %s30 = int_to_ptr.vmem [resolvable:$true] %s29
      %32 = dma.hbm_to_vmem [thread:$0]  %s1, 128, %s30, [#allocation6]
    $region9: #{tpu_custom_call.1} parent=1 // pred_fallthru
      _
    // Predicated region
    $region10: #{tpu_custom_call.1} parent=1 // pred_check
      _
    $region11: #{tpu_custom_call.1} parent=1 // pred_check_branch
      %34 = sbr.rel (0) target = $region13
    $region12: #{tpu_custom_call.1} parent=1 // pred_region
      _
    $region13: #{tpu_custom_call.1} parent=1 // pred_fallthru
      _
    // Predicated region
    $region14: #{tpu_custom_call.1} parent=1 // pred_check
      _
    $region15: #{tpu_custom_call.1} parent=1 // pred_check_branch
      %36 = sbr.rel (0) target = $region17
    $region16: #{tpu_custom_call.1} parent=1 // pred_region
      %37 = dma.done [#allocation3], 128
    $region17: #{tpu_custom_call.1} parent=1 // pred_fallthru
      _
    // Predicated region
    $region18: #{tpu_custom_call.1} parent=1 // pred_check
      _
    $region19: #{tpu_custom_call.1} parent=1 // pred_check_branch
      %39 = sbr.rel (0) target = $region21
    $region20: #{tpu_custom_call.1} parent=1 // pred_region
      %40 = dma.done [#allocation6], 128
    $region21: #{tpu_custom_call.1} parent=1 // pred_fallthru
      _
    %v41 = vld [vmem:[#allocation2] sm:$0xff]
    %v42 = vld [vmem:[#allocation5] sm:$0xff]
    %v43 = vld [vmem:[%s2] sm:$0x1]
    %v45 = vlaneseq
    %v46 = vshrl.u32 %v45, 7
    %v47 = vsub.s32 0, %v46
    %v48 = vrot.slane %v43, %v47
    %vm50 = vcmask 64512
    %v52 = vsel %vm50, %v41, 0
    %54 = vmatprep.subr.mxu0 0.0
    %55 = vmatpush1.msra.mxu0 %v42
    %56 = vmatprep.subr.mxu0 0.0
    %57 = vmatpush1.msra.mxu0 0.0
    %58 = vmatprep.subr.mxu0 0.0
    %59 = vmatpush1.msra.mxu0 0.0
    %60 = vmatprep.subr.mxu0 0.0
    %61 = vmatpush1.msra.mxu0 0.0
    %62 = vmatprep.subr.mxu0 0.0
    %63 = vmatpush1.msra.mxu0 0.0
    %64 = vmatprep.subr.mxu0 0.0
    %65 = vmatpush1.msra.mxu0 0.0
    %66 = vmatprep.subr.mxu0 0.0
    %67 = vmatpush1.msra.mxu0 0.0
    %68 = vmatprep.subr.mxu0 0.0
    %69 = vmatpush1.msra.mxu0 0.0
    %70 = vmatprep.subr.mxu0 0.0
    %71 = vmatpush1.msra.mxu0 0.0
    %72 = vmatprep.subr.mxu0 0.0
    %73 = vmatpush1.msra.mxu0 0.0
    %74 = vmatprep.subr.mxu0 0.0
    %75 = vmatpush1.msra.mxu0 0.0
    %76 = vmatprep.subr.mxu0 0.0
    %77 = vmatpush1.msra.mxu0 0.0
    %78 = vmatprep.subr.mxu0 0.0
    %79 = vmatpush1.msra.mxu0 0.0
    %80 = vmatprep.subr.mxu0 0.0
    %81 = vmatpush1.msra.mxu0 0.0
    %82 = vmatprep.subr.mxu0 0.0
    %83 = vmatpush1.msra.mxu0 0.0
    %84 = vmatprep.subr.mxu0 0.0
    %85 = vmatpush1.msra.mxu0 0.0
    %86 = vmatprep.subr.mxu0 0.0
    %87 = vmatpush1.msra.mxu0 0.0
    %88 = vmatprep.subr.mxu0 0.0
    %89 = vmatpush1.msra.mxu0 0.0
    %90 = vmatprep.subr.mxu0 0.0
    %91 = vmatpush1.msra.mxu0 0.0
    %92 = vmatprep.subr.mxu0 0.0
    %93 = vmatpush1.msra.mxu0 0.0
    %94 = vmatprep.subr.mxu0 0.0
    %95 = vmatpush1.msra.mxu0 0.0
    %96 = vmatprep.subr.mxu0 0.0
    %97 = vmatpush1.msra.mxu0 0.0
    %98 = vmatprep.subr.mxu0 0.0
    %99 = vmatpush1.msra.mxu0 0.0
    %100 = vmatprep.subr.mxu0 0.0
    %101 = vmatpush1.msra.mxu0 0.0
    %102 = vmatprep.subr.mxu0 0.0
    %103 = vmatpush1.msra.mxu0 0.0
    %104 = vmatprep.subr.mxu0 0.0
    %105 = vmatpush1.msra.mxu0 0.0
    %106 = vmatprep.subr.mxu0 0.0
    %107 = vmatpush1.msra.mxu0 0.0
    %108 = vmatprep.subr.mxu0 0.0
    %109 = vmatpush1.msra.mxu0 0.0
    %110 = vmatprep.subr.mxu0 0.0
    %111 = vmatpush1.msra.mxu0 0.0
    %112 = vmatprep.subr.mxu0 0.0
    %113 = vmatpush1.msra.mxu0 0.0
    %114 = vmatprep.subr.mxu0 0.0
    %115 = vmatpush1.msra.mxu0 0.0
    %116 = vmatprep.subr.mxu0 0.0
    %117 = vmatpush1.msra.mxu0 0.0
    %118 = vmatprep.mubr.f32.mxu0 0.0
    %119 = vmatmul.mubr.f32.gmra.mrb[0].mxu0 %v52
    %v120 = vpop.f32.mrb[0].mxu0
    %v121 = vadd.f32 %v48, %v120
    %v122 = vpop.f32.mrb[0].mxu0
    %123 = vdwg.mxu0
    %v124 = vmul.f32 %v121, 0.5
    %v125 = vtanh.pop %v124
    %v126 = vadd.f32 %v125, 1.0
    %v127 = vmul.f32 %v126, 0.5
    %vm128 = vcmask 818176
    %129 = vst.msk [vmem:[#allocation7] sm:$0xff] %vm128, %v127
    // Predicated region
    $region22: #{tpu_custom_call.1} parent=1 // pred_check
      _
    $region23: #{tpu_custom_call.1} parent=1 // pred_check_branch
      %131 = sbr.rel (0) target = $region25
    $region24: #{tpu_custom_call.1} parent=1 // pred_region
      %s133 = ssub.s32 128, 32
      %134 = vsyncadd [#allocation4], %s133
      %s135 = sshll.u32 [#allocation7], 4
      %s136 = int_to_ptr.vmem [resolvable:$true] %s135
      %141 = dma.vmem_to_hbm [thread:$0]  %s136, 32, %s3, [#allocation4], 32, 32, 2
    $region25: #{tpu_custom_call.1} parent=1 // pred_fallthru
      _
    // Predicated region
    $region26: #{tpu_custom_call.1} parent=1 // pred_check
      _
    $region27: #{tpu_custom_call.1} parent=1 // pred_check_branch
      %143 = sbr.rel (0) target = $region29
    $region28: #{tpu_custom_call.1} parent=1 // pred_region
      %144 = dma.done [#allocation4], 128
    $region29: #{tpu_custom_call.1} parent=1 // pred_fallthru
      _
    %145 = vsyncpa [#allocation3], 1
    %146 = vsyncpa [#allocation6], 1
    %147 = vsyncpa [#allocation4], 1

</llo_original>
